<compile_context>
chip_gen: v6e
topology: v6e:2x2x1
jax: 0.10.0
libtpu: 0.0.40
codegen_flags: <defaults>
</compile_context>

<pallas_src>
import numpy as np

import jax
import jax.numpy as jnp
from jax.experimental import pallas as pl
from jax.experimental.pallas import tpu as pltpu

KH = KW = 3  # 3x3 conv, padding=1, stride=1, inplanes == planes


def _aux_block_kernel(x_ref, w1_ref, s1_ref, b1_ref, w2_ref, s2_ref, b2_ref,
                      o_ref, pad_ref):
    # x_ref  : (NB, H, W*C) f32     lane-dense input block (also the identity)
    # w*_ref : (3*W*C, W*C) bf16    Toeplitz conv weights, kh taps stacked on K
    # s*,b*  : (1, W*C) f32         folded BN scale / bias, tiled over W
    # o_ref  : (NB, H, W*C)         lane-dense output block
    # pad_ref: (NB*(H+1)+1, W*C) f32 row-stacked scratch: one zero row above
    #          the first image, one shared zero seam row between images, one
    #          below the last image; reused by conv1 and conv2.
    NB, H, WC = o_ref.shape
    rows = pad_ref.shape[0]            # NB*(H+1) + 1
    M = rows - 2                       # output rows produced by each conv dot
    stride = H + 1                     # row stride between stacked images

    # ---- zero the NB+1 pad/seam rows (every step; safe under 'parallel',
    #      interior rows are fully overwritten below) -------------------------
    for n in range(NB + 1):
        r = n * stride
        pad_ref[r:r + 1, :] = jnp.zeros((1, WC), jnp.float32)

    # ---- stage x into the interior rows (full lane width, lane offset 0) ----
    for n in range(NB):
        r0 = n * stride + 1
        pad_ref[r0:r0 + H, :] = x_ref[n].astype(jnp.float32)

    def conv_bn(w_ref, s_ref, b_ref):
        # Single fused dot per conv: LHS = three row-shifted windows
        # lane-concatenated (K = 3*W*C), bf16 operands, f32 accumulation.
        lhs = jnp.concatenate(
            [pad_ref[0:M, :], pad_ref[1:M + 1, :], pad_ref[2:M + 2, :]],
            axis=1).astype(jnp.bfloat16)
        acc = jnp.dot(lhs, w_ref[...], preferred_element_type=jnp.float32)
        return acc * s_ref[...] + b_ref[...]           # (M, W*C) f32

    # ---- conv1 + bn1 + relu --------------------------------------------------
    out1 = jnp.maximum(conv_bn(w1_ref, s1_ref, b1_ref), 0.0)

    # ---- stage out1 back into the interior (per image, so the junk seam
    #      output rows never touch the zero pad rows) --------------------------
    for n in range(NB):
        r0 = n * stride
        pad_ref[r0 + 1:r0 + 1 + H, :] = out1[r0:r0 + H, :]

    # ---- conv2 + bn2 ---------------------------------------------------------
    out2 = conv_bn(w2_ref, s2_ref, b2_ref)

    # ---- residual add + relu, lane-dense per-image stores --------------------
    for n in range(NB):
        r0 = n * stride
        res = out2[r0:r0 + H, :] + x_ref[n].astype(jnp.float32)
        o_ref[n, :, :] = jnp.maximum(res, 0.0).astype(o_ref.dtype)


def _toeplitz_rhs(w_hwio, W, dtype=jnp.bfloat16):
    """Fold the dw taps, channel mixing AND left/right SAME padding of a 3x3
    conv into per-kh RHS matrices stacked along K:

        out[h, ww*Cout+co] = sum_dh padded_image_row[h+dh-1] @ rhs_dh[:, ww*Cout+co]

    Returns shape (KH * W*Cin, W*Cout); column blocks whose source column
    ww + dw - 1 falls outside [0, W) are left zero. Host-side, tiny."""
    kh, kw, cin, cout = w_hwio.shape
    w = np.asarray(w_hwio, np.float32)
    rhs = np.zeros((kh, W * cin, W * cout), np.float32)
    for dh in range(kh):
        for dw in range(kw):
            for ww in range(W):
                src = ww + dw - 1          # input column feeding output col ww
                if 0 <= src < W:
                    rhs[dh, src * cin:(src + 1) * cin,
                        ww * cout:(ww + 1) * cout] = w[dh, dw]
    return jnp.asarray(rhs.reshape(kh * W * cin, W * cout), dtype)


def auxiliary_block(x_nhwc, w1_hwio, s1, b1, w2_hwio, s2, b2, *,
                    batch_block=None):
    """Fused AuxiliaryBlock (stride=1, no downsample). x_nhwc: (N, H, W, C)."""
    N, H, W, C = x_nhwc.shape
    Cout = w1_hwio.shape[-1]
    assert C == Cout, "no downsample: inplanes must equal planes"
    WC = W * C
    assert WC % 128 == 0, (
        f"lane-dense layout requires W*C to be a multiple of 128 (got {WC})")
    NB = N if batch_block is None else batch_block
    assert N % NB == 0, "batch must be divisible by the batch block"
    rows = NB * (H + 1) + 1

    # Free, contiguous reshape to the lane-dense (N, H, W*C) layout.
    x2d = x_nhwc.reshape(N, H, WC)

    w1_r = _toeplitz_rhs(w1_hwio, W)              # (3*W*C, W*C) bf16, resident
    w2_r = _toeplitz_rhs(w2_hwio, W)
    s1_t = jnp.tile(s1, W).reshape(1, WC).astype(jnp.float32)
    b1_t = jnp.tile(b1, W).reshape(1, WC).astype(jnp.float32)
    s2_t = jnp.tile(s2, W).reshape(1, WC).astype(jnp.float32)
    b2_t = jnp.tile(b2, W).reshape(1, WC).astype(jnp.float32)

    grid_spec = pltpu.PrefetchScalarGridSpec(
        num_scalar_prefetch=0,
        grid=(N // NB,),
        in_specs=[
            pl.BlockSpec((NB, H, WC), lambda b: (b, 0, 0)),   # x (+identity)
            pl.BlockSpec((KH * WC, WC), lambda b: (0, 0)),    # w1 (grid-invariant)
            pl.BlockSpec((1, WC), lambda b: (0, 0)),          # s1
            pl.BlockSpec((1, WC), lambda b: (0, 0)),          # b1
            pl.BlockSpec((KH * WC, WC), lambda b: (0, 0)),    # w2 (grid-invariant)
            pl.BlockSpec((1, WC), lambda b: (0, 0)),          # s2
            pl.BlockSpec((1, WC), lambda b: (0, 0)),          # b2
        ],
        out_specs=pl.BlockSpec((NB, H, WC), lambda b: (b, 0, 0)),
        scratch_shapes=[pltpu.VMEM((rows, WC), jnp.float32)],
    )

    out2d = pl.pallas_call(
        _aux_block_kernel,
        out_shape=jax.ShapeDtypeStruct((N, H, WC), x_nhwc.dtype),
        grid_spec=grid_spec,
        compiler_params=pltpu.CompilerParams(
            dimension_semantics=("parallel",)),
    )(x2d, w1_r, s1_t, b1_t, w2_r, s2_t, b2_t)

    return out2d.reshape(N, H, W, C)


def _fold_bn(gamma, beta, mean, var, eps=1e-5):
    scale = gamma / jnp.sqrt(var + eps)
    bias = beta - mean * scale
    return scale, bias


def _ref_forward(x_nhwc, w1_hwio, s1, b1, w2_hwio, s2, b2, match_bf16=False):
    """JAX reference. With match_bf16=True the conv operands are rounded to
    bf16 (exactly what the kernel feeds the MXU), so the only residual
    difference is f32 accumulation order."""
    dn = ("NHWC", "HWIO", "NHWC")
    q = (lambda a: a.astype(jnp.bfloat16).astype(jnp.float32)) if match_bf16 \
        else (lambda a: a)
    out = jax.lax.conv_general_dilated(q(x_nhwc), q(w1_hwio), (1, 1), "SAME",
                                       dimension_numbers=dn)
    out = jnp.maximum(out * s1 + b1, 0.0)
    out = jax.lax.conv_general_dilated(q(out), q(w2_hwio), (1, 1), "SAME",
                                       dimension_numbers=dn)
    out = out * s2 + b2
    return jnp.maximum(out + x_nhwc, 0.0)


if __name__ == "__main__":
    key = jax.random.PRNGKey(0)
    N, C, H, W = 2, 8, 16, 16          # inplanes = planes = 8; W*C = 128
    ks = jax.random.split(key, 11)

    # Input built in PyTorch's NCHW convention, then transposed to NHWC.
    x_nchw = jax.random.normal(ks[0], (N, C, H, W), jnp.float32)
    x_nhwc = jnp.transpose(x_nchw, (0, 2, 3, 1))

    # conv weights: PyTorch OIHW -> HWIO
    w1 = jax.random.normal(ks[1], (C, C, KH, KW), jnp.float32) * 0.1
    w2 = jax.random.normal(ks[2], (C, C, KH, KW), jnp.float32) * 0.1
    w1_hwio = jnp.transpose(w1, (2, 3, 1, 0))
    w2_hwio = jnp.transpose(w2, (2, 3, 1, 0))

    # BatchNorm params (inference / running stats, folded to scale & bias)
    g1 = 1.0 + 0.1 * jax.random.normal(ks[3], (C,), jnp.float32)
    be1 = 0.1 * jax.random.normal(ks[4], (C,), jnp.float32)
    m1 = 0.1 * jax.random.normal(ks[5], (C,), jnp.float32)
    v1 = jnp.abs(jax.random.normal(ks[6], (C,), jnp.float32)) + 0.5
    g2 = 1.0 + 0.1 * jax.random.normal(ks[7], (C,), jnp.float32)
    be2 = 0.1 * jax.random.normal(ks[8], (C,), jnp.float32)
    m2 = 0.1 * jax.random.normal(ks[9], (C,), jnp.float32)
    v2 = jnp.abs(jax.random.normal(ks[10], (C,), jnp.float32)) + 0.5

    s1, b1 = _fold_bn(g1, be1, m1, v1)
    s2, b2 = _fold_bn(g2, be2, m2, v2)

    out = auxiliary_block(x_nhwc, w1_hwio, s1, b1, w2_hwio, s2, b2)
    out = jax.block_until_ready(out)

    # Tight check vs a reference using the same bf16 conv operands + f32 acc.
    ref_bf16 = _ref_forward(x_nhwc, w1_hwio, s1, b1, w2_hwio, s2, b2,
                            match_bf16=True)
    assert jnp.allclose(out, ref_bf16, atol=5e-3, rtol=5e-3), \
        "mismatch vs bf16-operand JAX reference"

    # Loose sanity check vs the pure-f32 reference (bf16 quantization noise).
    ref_f32 = _ref_forward(x_nhwc, w1_hwio, s1, b1, w2_hwio, s2, b2)
    assert jnp.allclose(out, ref_f32, atol=5e-2, rtol=5e-2), \
        "mismatch vs f32 JAX reference"

    print("KERNEL_OK")
</pallas_src>

<mosaic_0001>
module attributes {stable_mosaic.version = 11 : i64} {
  func.func @_aux_block_kernel(%arg0: i32, %arg1: memref<2x16x128xf32, #tpu.memory_space<vmem>>, %arg2: memref<384x128xbf16, #tpu.memory_space<vmem>>, %arg3: memref<1x128xf32, #tpu.memory_space<vmem>>, %arg4: memref<1x128xf32, #tpu.memory_space<vmem>>, %arg5: memref<384x128xbf16, #tpu.memory_space<vmem>>, %arg6: memref<1x128xf32, #tpu.memory_space<vmem>>, %arg7: memref<1x128xf32, #tpu.memory_space<vmem>>, %arg8: memref<2x16x128xf32, #tpu.memory_space<vmem>>, %arg9: memref<35x128xf32, #tpu.memory_space<vmem>>) attributes {dimension_semantics = [#tpu.dimension_semantics<parallel>], iteration_bounds = array<i64: 1>, scalar_prefetch = 0 : i64, scratch_operands = 1 : i64, tpu.core_type = #tpu.core_type<tc>, window_params = [{transform_indices = @transform_0, window_bounds = array<i64: 2, 16, 128>}, {pipeline_mode = #tpu.pipeline_mode<synchronous>, transform_indices = @transform_1, window_bounds = array<i64: 384, 128>}, {pipeline_mode = #tpu.pipeline_mode<synchronous>, transform_indices = @transform_2, window_bounds = array<i64: 1, 128>}, {pipeline_mode = #tpu.pipeline_mode<synchronous>, transform_indices = @transform_3, window_bounds = array<i64: 1, 128>}, {pipeline_mode = #tpu.pipeline_mode<synchronous>, transform_indices = @transform_4, window_bounds = array<i64: 384, 128>}, {pipeline_mode = #tpu.pipeline_mode<synchronous>, transform_indices = @transform_5, window_bounds = array<i64: 1, 128>}, {pipeline_mode = #tpu.pipeline_mode<synchronous>, transform_indices = @transform_6, window_bounds = array<i64: 1, 128>}, {transform_indices = @transform_7, window_bounds = array<i64: 2, 16, 128>}]} {
    %cst = arith.constant 0.000000e+00 : f32
    %0 = vector.broadcast %cst : f32 to vector<1x128xf32>
    %c0 = arith.constant 0 : index
    %c0_0 = arith.constant 0 : index
    %1 = vector.load %arg9[%c0, %c0_0] : memref<35x128xf32, #tpu.memory_space<vmem>>, vector<1x128xf32>
    tpu.vector_store %arg9[%c0, %c0_0], %0 {strides = array<i32>} : memref<35x128xf32, #tpu.memory_space<vmem>>, vector<1x128xf32>,
    %cst_1 = arith.constant 0.000000e+00 : f32
    %2 = vector.broadcast %cst_1 : f32 to vector<1x128xf32>
    %c17 = arith.constant 17 : index
    %c0_2 = arith.constant 0 : index
    %3 = vector.load %arg9[%c17, %c0_2] : memref<35x128xf32, #tpu.memory_space<vmem>>, vector<1x128xf32>
    tpu.vector_store %arg9[%c17, %c0_2], %2 {strides = array<i32>} : memref<35x128xf32, #tpu.memory_space<vmem>>, vector<1x128xf32>,
    %cst_3 = arith.constant 0.000000e+00 : f32
    %4 = vector.broadcast %cst_3 : f32 to vector<1x128xf32>
    %c34 = arith.constant 34 : index
    %c0_4 = arith.constant 0 : index
    %5 = vector.load %arg9[%c34, %c0_4] : memref<35x128xf32, #tpu.memory_space<vmem>>, vector<1x128xf32>
    tpu.vector_store %arg9[%c34, %c0_4], %4 {strides = array<i32>} : memref<35x128xf32, #tpu.memory_space<vmem>>, vector<1x128xf32>,
    %c0_5 = arith.constant 0 : index
    %c0_6 = arith.constant 0 : index
    %c0_7 = arith.constant 0 : index
    %6 = vector.load %arg1[%c0_5, %c0_6, %c0_7] : memref<2x16x128xf32, #tpu.memory_space<vmem>>, vector<1x16x128xf32>
    %7 = vector.shape_cast %6 : vector<1x16x128xf32> to vector<16x128xf32>
    %c1 = arith.constant 1 : index
    %c0_8 = arith.constant 0 : index
    %8 = vector.load %arg9[%c1, %c0_8] : memref<35x128xf32, #tpu.memory_space<vmem>>, vector<16x128xf32>
    tpu.vector_store %arg9[%c1, %c0_8], %7 {strides = array<i32>} : memref<35x128xf32, #tpu.memory_space<vmem>>, vector<16x128xf32>,
    %c1_9 = arith.constant 1 : index
    %c0_10 = arith.constant 0 : index
    %c0_11 = arith.constant 0 : index
    %9 = vector.load %arg1[%c1_9, %c0_10, %c0_11] : memref<2x16x128xf32, #tpu.memory_space<vmem>>, vector<1x16x128xf32>
    %10 = vector.shape_cast %9 : vector<1x16x128xf32> to vector<16x128xf32>
    %c18 = arith.constant 18 : index
    %c0_12 = arith.constant 0 : index
    %11 = vector.load %arg9[%c18, %c0_12] : memref<35x128xf32, #tpu.memory_space<vmem>>, vector<16x128xf32>
    tpu.vector_store %arg9[%c18, %c0_12], %10 {strides = array<i32>} : memref<35x128xf32, #tpu.memory_space<vmem>>, vector<16x128xf32>,
    %c0_13 = arith.constant 0 : index
    %c0_14 = arith.constant 0 : index
    %12 = vector.load %arg9[%c0_13, %c0_14] : memref<35x128xf32, #tpu.memory_space<vmem>>, vector<33x128xf32>
    %c1_15 = arith.constant 1 : index
    %c0_16 = arith.constant 0 : index
    %13 = vector.load %arg9[%c1_15, %c0_16] : memref<35x128xf32, #tpu.memory_space<vmem>>, vector<33x128xf32>
    %c2 = arith.constant 2 : index
    %c0_17 = arith.constant 0 : index
    %14 = vector.load %arg9[%c2, %c0_17] : memref<35x128xf32, #tpu.memory_space<vmem>>, vector<33x128xf32>
    %15 = tpu.concatenate %12, %13, %14 in 1 : vector<33x128xf32>, vector<33x128xf32>, vector<33x128xf32> -> vector<33x384xf32>
    %16 = arith.truncf %15 : vector<33x384xf32> to vector<33x384xbf16>
    %c0_18 = arith.constant 0 : index
    %c0_19 = arith.constant 0 : index
    %17 = vector.load %arg2[%c0_18, %c0_19] : memref<384x128xbf16, #tpu.memory_space<vmem>>, vector<384x128xbf16>
    %cst_20 = arith.constant dense<0.000000e+00> : vector<33x128xf32>
    %18 = tpu.matmul %16, %17, %cst_20 {dimension_numbers = #tpu.dot_dimension_numbers<[1], [0], [0], [1], [0, 0, 1, 1], [], []>} : vector<33x384xbf16>, vector<384x128xbf16>, vector<33x128xf32> -> vector<33x128xf32>
    %c0_21 = arith.constant 0 : index
    %c0_22 = arith.constant 0 : index
    %19 = vector.load %arg3[%c0_21, %c0_22] : memref<1x128xf32, #tpu.memory_space<vmem>>, vector<1x128xf32>
    %20 = vector.broadcast %19 : vector<1x128xf32> to vector<33x128xf32>
    %21 = arith.mulf %18, %20 : vector<33x128xf32>
    %c0_23 = arith.constant 0 : index
    %c0_24 = arith.constant 0 : index
    %22 = vector.load %arg4[%c0_23, %c0_24] : memref<1x128xf32, #tpu.memory_space<vmem>>, vector<1x128xf32>
    %23 = vector.broadcast %22 : vector<1x128xf32> to vector<33x128xf32>
    %24 = arith.addf %21, %23 : vector<33x128xf32>
    %cst_25 = arith.constant 0.000000e+00 : f32
    %25 = vector.broadcast %cst_25 : f32 to vector<33x128xf32>
    %26 = arith.maximumf %24, %25 : vector<33x128xf32>
    %27 = vector.extract_strided_slice %26 {offsets = [0, 0], sizes = [16, 128], strides = [1, 1]} : vector<33x128xf32> to vector<16x128xf32>
    %c1_26 = arith.constant 1 : index
    %c0_27 = arith.constant 0 : index
    %28 = vector.load %arg9[%c1_26, %c0_27] : memref<35x128xf32, #tpu.memory_space<vmem>>, vector<16x128xf32>
    tpu.vector_store %arg9[%c1_26, %c0_27], %27 {strides = array<i32>} : memref<35x128xf32, #tpu.memory_space<vmem>>, vector<16x128xf32>,
    %29 = vector.extract_strided_slice %26 {offsets = [17, 0], sizes = [16, 128], strides = [1, 1]} : vector<33x128xf32> to vector<16x128xf32>
    %c18_28 = arith.constant 18 : index
    %c0_29 = arith.constant 0 : index
    %30 = vector.load %arg9[%c18_28, %c0_29] : memref<35x128xf32, #tpu.memory_space<vmem>>, vector<16x128xf32>
    tpu.vector_store %arg9[%c18_28, %c0_29], %29 {strides = array<i32>} : memref<35x128xf32, #tpu.memory_space<vmem>>, vector<16x128xf32>,
    %c0_30 = arith.constant 0 : index
    %c0_31 = arith.constant 0 : index
    %31 = vector.load %arg9[%c0_30, %c0_31] : memref<35x128xf32, #tpu.memory_space<vmem>>, vector<33x128xf32>
    %c1_32 = arith.constant 1 : index
    %c0_33 = arith.constant 0 : index
    %32 = vector.load %arg9[%c1_32, %c0_33] : memref<35x128xf32, #tpu.memory_space<vmem>>, vector<33x128xf32>
    %c2_34 = arith.constant 2 : index
    %c0_35 = arith.constant 0 : index
    %33 = vector.load %arg9[%c2_34, %c0_35] : memref<35x128xf32, #tpu.memory_space<vmem>>, vector<33x128xf32>
    %34 = tpu.concatenate %31, %32, %33 in 1 : vector<33x128xf32>, vector<33x128xf32>, vector<33x128xf32> -> vector<33x384xf32>
    %35 = arith.truncf %34 : vector<33x384xf32> to vector<33x384xbf16>
    %c0_36 = arith.constant 0 : index
    %c0_37 = arith.constant 0 : index
    %36 = vector.load %arg5[%c0_36, %c0_37] : memref<384x128xbf16, #tpu.memory_space<vmem>>, vector<384x128xbf16>
    %cst_38 = arith.constant dense<0.000000e+00> : vector<33x128xf32>
    %37 = tpu.matmul %35, %36, %cst_38 {dimension_numbers = #tpu.dot_dimension_numbers<[1], [0], [0], [1], [0, 0, 1, 1], [], []>} : vector<33x384xbf16>, vector<384x128xbf16>, vector<33x128xf32> -> vector<33x128xf32>
    %c0_39 = arith.constant 0 : index
    %c0_40 = arith.constant 0 : index
    %38 = vector.load %arg6[%c0_39, %c0_40] : memref<1x128xf32, #tpu.memory_space<vmem>>, vector<1x128xf32>
    %39 = vector.broadcast %38 : vector<1x128xf32> to vector<33x128xf32>
    %40 = arith.mulf %37, %39 : vector<33x128xf32>
    %c0_41 = arith.constant 0 : index
    %c0_42 = arith.constant 0 : index
    %41 = vector.load %arg7[%c0_41, %c0_42] : memref<1x128xf32, #tpu.memory_space<vmem>>, vector<1x128xf32>
    %42 = vector.broadcast %41 : vector<1x128xf32> to vector<33x128xf32>
    %43 = arith.addf %40, %42 : vector<33x128xf32>
    %44 = vector.extract_strided_slice %43 {offsets = [0, 0], sizes = [16, 128], strides = [1, 1]} : vector<33x128xf32> to vector<16x128xf32>
    %c0_43 = arith.constant 0 : index
    %c0_44 = arith.constant 0 : index
    %c0_45 = arith.constant 0 : index
    %45 = vector.load %arg1[%c0_43, %c0_44, %c0_45] : memref<2x16x128xf32, #tpu.memory_space<vmem>>, vector<1x16x128xf32>
    %46 = vector.shape_cast %45 : vector<1x16x128xf32> to vector<16x128xf32>
    %47 = arith.addf %44, %46 : vector<16x128xf32>
    %cst_46 = arith.constant 0.000000e+00 : f32
    %48 = vector.broadcast %cst_46 : f32 to vector<16x128xf32>
    %49 = arith.maximumf %47, %48 : vector<16x128xf32>
    %c0_47 = arith.constant 0 : index
    %c0_48 = arith.constant 0 : index
    %c0_49 = arith.constant 0 : index
    %50 = vector.load %arg8[%c0_47, %c0_48, %c0_49] : memref<2x16x128xf32, #tpu.memory_space<vmem>>, vector<1x16x128xf32>
    %51 = vector.shape_cast %50 : vector<1x16x128xf32> to vector<16x128xf32>
    %52 = vector.shape_cast %49 : vector<16x128xf32> to vector<1x16x128xf32>
    tpu.vector_store %arg8[%c0_47, %c0_48, %c0_49], %52 {strides = array<i32>} : memref<2x16x128xf32, #tpu.memory_space<vmem>>, vector<1x16x128xf32>,
    %53 = vector.extract_strided_slice %43 {offsets = [17, 0], sizes = [16, 128], strides = [1, 1]} : vector<33x128xf32> to vector<16x128xf32>
    %c1_50 = arith.constant 1 : index
    %c0_51 = arith.constant 0 : index
    %c0_52 = arith.constant 0 : index
    %54 = vector.load %arg1[%c1_50, %c0_51, %c0_52] : memref<2x16x128xf32, #tpu.memory_space<vmem>>, vector<1x16x128xf32>
    %55 = vector.shape_cast %54 : vector<1x16x128xf32> to vector<16x128xf32>
    %56 = arith.addf %53, %55 : vector<16x128xf32>
    %cst_53 = arith.constant 0.000000e+00 : f32
    %57 = vector.broadcast %cst_53 : f32 to vector<16x128xf32>
    %58 = arith.maximumf %56, %57 : vector<16x128xf32>
    %c1_54 = arith.constant 1 : index
    %c0_55 = arith.constant 0 : index
    %c0_56 = arith.constant 0 : index
    %59 = vector.load %arg8[%c1_54, %c0_55, %c0_56] : memref<2x16x128xf32, #tpu.memory_space<vmem>>, vector<1x16x128xf32>
    %60 = vector.shape_cast %59 : vector<1x16x128xf32> to vector<16x128xf32>
    %61 = vector.shape_cast %58 : vector<16x128xf32> to vector<1x16x128xf32>
    tpu.vector_store %arg8[%c1_54, %c0_55, %c0_56], %61 {strides = array<i32>} : memref<2x16x128xf32, #tpu.memory_space<vmem>>, vector<1x16x128xf32>,
    return
  }
  func.func @transform_0(%arg0: i32) -> (i32, i32, i32) {
    %c0_i32 = arith.constant 0 : i32
    %c0_i32_0 = arith.constant 0 : i32
    %c0_i32_1 = arith.constant 0 : i32
    return %arg0, %c0_i32, %c0_i32_0 : i32, i32, i32
  }
  func.func @transform_1(%arg0: i32) -> (i32, i32) {
    %c0_i32 = arith.constant 0 : i32
    %c0_i32_0 = arith.constant 0 : i32
    %c0_i32_1 = arith.constant 0 : i32
    return %c0_i32, %c0_i32_0 : i32, i32
  }
  func.func @transform_2(%arg0: i32) -> (i32, i32) {
    %c0_i32 = arith.constant 0 : i32
    %c0_i32_0 = arith.constant 0 : i32
    %c0_i32_1 = arith.constant 0 : i32
    return %c0_i32, %c0_i32_0 : i32, i32
  }
  func.func @transform_3(%arg0: i32) -> (i32, i32) {
    %c0_i32 = arith.constant 0 : i32
    %c0_i32_0 = arith.constant 0 : i32
    %c0_i32_1 = arith.constant 0 : i32
    return %c0_i32, %c0_i32_0 : i32, i32
  }
  func.func @transform_4(%arg0: i32) -> (i32, i32) {
    %c0_i32 = arith.constant 0 : i32
    %c0_i32_0 = arith.constant 0 : i32
    %c0_i32_1 = arith.constant 0 : i32
    return %c0_i32, %c0_i32_0 : i32, i32
  }
  func.func @transform_5(%arg0: i32) -> (i32, i32) {
    %c0_i32 = arith.constant 0 : i32
    %c0_i32_0 = arith.constant 0 : i32
    %c0_i32_1 = arith.constant 0 : i32
    return %c0_i32, %c0_i32_0 : i32, i32
  }
  func.func @transform_6(%arg0: i32) -> (i32, i32) {
    %c0_i32 = arith.constant 0 : i32
    %c0_i32_0 = arith.constant 0 : i32
    %c0_i32_1 = arith.constant 0 : i32
    return %c0_i32, %c0_i32_0 : i32, i32
  }
  func.func @transform_7(%arg0: i32) -> (i32, i32, i32) {
    %c0_i32 = arith.constant 0 : i32
    %c0_i32_0 = arith.constant 0 : i32
    %c0_i32_1 = arith.constant 0 : i32
    return %arg0, %c0_i32, %c0_i32_0 : i32, i32, i32
  }
}

</mosaic_0001>

<llo_original>
// kernel: tpu_custom_call.1
$region0: #{tpu_custom_call.1}
  #allocation0 [shape = 'u32[]', space=smem, size = 0x4, offset = 0x4, fixed_abs, tag = 'smem constant byte address 0x4 - core index']
  #allocation1 [shape = 'u32[144,128]{1,0:T(1,128)}', space=vmem, size = 0x12000, scoped, tag = 'internal scratch']
  #allocation2 [shape = 'f32[35,128]{1,0:T(8,128)}', space=vmem, size = 0x5000, scoped, tag = 'scratch operand']
  %s0 = inlined_call_operand.hbm [shape: f32[2,16,128], index: 0, kind: input, shape index: {}]
  %s1 = inlined_call_operand.hbm [shape: bf16[384,128], index: 1, kind: input, shape index: {}]
  %s2 = inlined_call_operand.vmem [shape: f32[1,128], index: 2, kind: input, shape index: {}]
  %s3 = inlined_call_operand.vmem [shape: f32[1,128], index: 3, kind: input, shape index: {}]
  %s4 = inlined_call_operand.hbm [shape: bf16[384,128], index: 4, kind: input, shape index: {}]
  %s5 = inlined_call_operand.vmem [shape: f32[1,128], index: 5, kind: input, shape index: {}]
  %s6 = inlined_call_operand.vmem [shape: f32[1,128], index: 6, kind: input, shape index: {}]
  %s7 = inlined_call_operand.hbm [shape: f32[2,16,128], index: 7, kind: output, shape index: {}]
  %s8 = sld [smem:[#allocation0]]
  $region50: #{tpu_custom_call.1} parent=0
    _
  %s10 = ssub.s32 1, %s8
  %s11 = scalar_select 0, %s10, %s8
  $region1: #{tpu_custom_call.1} parent=0
    #allocation3 [shape = 'u8[16384]{0}', space=vmem, size = 0x4000, scoped, tag = 'input window, operand 0, single buffered']
    #allocation4 [shape = 's32[1]{0}', space=sflag, size = 0x4, scoped, tag = 'scoped memory for tpu_custom_call.1']
    #allocation5 [shape = 's32[1]{0}', space=sflag, size = 0x4, scoped, tag = 'scoped memory for tpu_custom_call.1']
    #allocation6 [shape = 'u8[98304]{0}', space=vmem, size = 0x18000, scoped, tag = 'input window, operand 1, single buffered']
    #allocation7 [shape = 's32[1]{0}', space=sflag, size = 0x4, scoped, tag = 'scoped memory for tpu_custom_call.1']
    #allocation8 [shape = 'u8[98304]{0}', space=vmem, size = 0x18000, scoped, tag = 'input window, operand 4, single buffered']
    #allocation9 [shape = 'u8[16384]{0}', space=vmem, size = 0x4000, scoped, tag = 'output window, operand 0, single buffered']
    %12 = vsyncpa [#allocation4], 0
    %13 = vsyncpa [#allocation7], 0
    %14 = vsyncpa [#allocation5], 0
    // Predicated region
    $region2: #{tpu_custom_call.1} parent=1 // pred_check
      _
    $region3: #{tpu_custom_call.1} parent=1 // pred_check_branch
      %16 = sbr.rel (0) target = $region5
    $region4: #{tpu_custom_call.1} parent=1 // pred_region
      %s18 = ssub.s32 512, 512
      %19 = vsyncadd [#allocation4], %s18
      %s20 = sshll.u32 [#allocation3], 4
      %s21 = int_to_ptr.vmem [resolvable:$true] %s20
      %26 = dma.hbm_to_vmem [thread:$0]  %s0, 512, %s21, [#allocation4], 128, 128, 8
    $region5: #{tpu_custom_call.1} parent=1 // pred_fallthru
      _
    // Predicated region
    $region6: #{tpu_custom_call.1} parent=1 // pred_check
      _
    $region7: #{tpu_custom_call.1} parent=1 // pred_check_branch
      %28 = sbr.rel (0) target = $region9
    $region8: #{tpu_custom_call.1} parent=1 // pred_region
      %s30 = ssub.s32 3072, 3072
      %31 = vsyncadd [#allocation7], %s30
      %s32 = sshll.u32 [#allocation6], 4
      %s33 = int_to_ptr.vmem [resolvable:$true] %s32
      %38 = dma.hbm_to_vmem [thread:$0]  %s1, 3072, %s33, [#allocation7], 64, 64, 4
    $region9: #{tpu_custom_call.1} parent=1 // pred_fallthru
      _
    // Predicated region
    $region10: #{tpu_custom_call.1} parent=1 // pred_check
      _
    $region11: #{tpu_custom_call.1} parent=1 // pred_check_branch
      %40 = sbr.rel (0) target = $region13
    $region12: #{tpu_custom_call.1} parent=1 // pred_region
      _
    $region13: #{tpu_custom_call.1} parent=1 // pred_fallthru
      _
    // Predicated region
    $region14: #{tpu_custom_call.1} parent=1 // pred_check
      _
    $region15: #{tpu_custom_call.1} parent=1 // pred_check_branch
      %42 = sbr.rel (0) target = $region17
    $region16: #{tpu_custom_call.1} parent=1 // pred_region
      _
    $region17: #{tpu_custom_call.1} parent=1 // pred_fallthru
      _
    // Predicated region
    $region18: #{tpu_custom_call.1} parent=1 // pred_check
      _
    $region19: #{tpu_custom_call.1} parent=1 // pred_check_branch
      %44 = sbr.rel (0) target = $region21
    $region20: #{tpu_custom_call.1} parent=1 // pred_region
      %s46 = ssub.s32 3072, 3072
      %47 = vsyncadd [#allocation7], %s46
      %s48 = sshll.u32 [#allocation8], 4
      %s49 = int_to_ptr.vmem [resolvable:$true] %s48
      %54 = dma.hbm_to_vmem [thread:$0]  %s4, 3072, %s49, [#allocation7], 64, 64, 4
    $region21: #{tpu_custom_call.1} parent=1 // pred_fallthru
      _
    // Predicated region
    $region22: #{tpu_custom_call.1} parent=1 // pred_check
      _
    $region23: #{tpu_custom_call.1} parent=1 // pred_check_branch
      %56 = sbr.rel (0) target = $region25
    $region24: #{tpu_custom_call.1} parent=1 // pred_region
      _
    $region25: #{tpu_custom_call.1} parent=1 // pred_fallthru
      _
    // Predicated region
    $region26: #{tpu_custom_call.1} parent=1 // pred_check
      _
    $region27: #{tpu_custom_call.1} parent=1 // pred_check_branch
      %58 = sbr.rel (0) target = $region29
    $region28: #{tpu_custom_call.1} parent=1 // pred_region
      _
    $region29: #{tpu_custom_call.1} parent=1 // pred_fallthru
      _
    // Predicated region
    $region30: #{tpu_custom_call.1} parent=1 // pred_check
      _
    $region31: #{tpu_custom_call.1} parent=1 // pred_check_branch
      %60 = sbr.rel (0) target = $region33
    $region32: #{tpu_custom_call.1} parent=1 // pred_region
      %61 = dma.done [#allocation4], 512
    $region33: #{tpu_custom_call.1} parent=1 // pred_fallthru
      _
    // Predicated region
    $region34: #{tpu_custom_call.1} parent=1 // pred_check
      _
    $region35: #{tpu_custom_call.1} parent=1 // pred_check_branch
      %63 = sbr.rel (0) target = $region37
    $region36: #{tpu_custom_call.1} parent=1 // pred_region
      %64 = dma.done [#allocation7], 3072
    $region37: #{tpu_custom_call.1} parent=1 // pred_fallthru
      _
    // Predicated region
    $region38: #{tpu_custom_call.1} parent=1 // pred_check
      _
    $region39: #{tpu_custom_call.1} parent=1 // pred_check_branch
      %66 = sbr.rel (0) target = $region41
    $region40: #{tpu_custom_call.1} parent=1 // pred_region
      %67 = dma.done [#allocation7], 3072
    $region41: #{tpu_custom_call.1} parent=1 // pred_fallthru
      _
    %69 = vst [vmem:[#allocation2] sm:$0x1] 0.0
    %70 = vst [vmem:[#allocation2 + $0x11] sm:$0x1] 0.0
    %71 = vst [vmem:[#allocation2 + $0x22] sm:$0x1] 0.0
    %v72 = vld [vmem:[#allocation3] sm:$0xff]
    %v73 = vld [vmem:[#allocation3 + $0x8] sm:$0xff]
    %74 = vst [vmem:[#allocation2 + $0x1] sm:$0xff] %v72
    %75 = vst [vmem:[#allocation2 + $0x9] sm:$0xff] %v73
    %s76 = scalar_lea.vmem [#allocation3], 16
    %v77 = vld [vmem:[%s76] sm:$0xff]
    %v78 = vld [vmem:[%s76 + $0x8] sm:$0xff]
    %79 = vst [vmem:[#allocation2 + $0x12] sm:$0xff] %v77
    %80 = vst [vmem:[#allocation2 + $0x1a] sm:$0xff] %v78
    %v81 = vld [vmem:[#allocation2] sm:$0xff]
    %v82 = vld [vmem:[#allocation2 + $0x8] sm:$0xff]
    %v83 = vld [vmem:[#allocation2 + $0x10] sm:$0xff]
    %v84 = vld [vmem:[#allocation2 + $0x18] sm:$0xff]
    %v85 = vld [vmem:[#allocation2 + $0x20] sm:$0x1]
    %v86 = vld [vmem:[#allocation2 + $0x1] sm:$0xff]
    %v87 = vld [vmem:[#allocation2 + $0x9] sm:$0xff]
    %v88 = vld [vmem:[#allocation2 + $0x11] sm:$0xff]
    %v89 = vld [vmem:[#allocation2 + $0x19] sm:$0xff]
    %v90 = vld [vmem:[#allocation2 + $0x21] sm:$0x1]
    %v91 = vld [vmem:[#allocation2 + $0x2] sm:$0xff]
    %v92 = vld [vmem:[#allocation2 + $0xa] sm:$0xff]
    %v93 = vld [vmem:[#allocation2 + $0x12] sm:$0xff]
    %v94 = vld [vmem:[#allocation2 + $0x1a] sm:$0xff]
    %v95 = vld [vmem:[#allocation2 + $0x22] sm:$0x1]
    %v96 = vpack.c.bf16 %v82, %v81
    %v97 = vpack.c.bf16 %v87, %v86
    %v98 = vpack.c.bf16 %v92, %v91
    %v99 = vpack.c.bf16 %v84, %v83
    %v100 = vpack.c.bf16 %v89, %v88
    %v101 = vpack.c.bf16 %v94, %v93
    %v102 = vpack.c.bf16 %v85, %v85
    %v103 = vpack.c.bf16 %v90, %v90
    %v104 = vpack.c.bf16 %v95, %v95
    %v105 = vld [vmem:[#allocation6] sm:$0xf]
    %v106 = vld [vmem:[#allocation6 + $0x4] sm:$0xf]
    %v107 = vld [vmem:[#allocation6 + $0x8] sm:$0xf]
    %v108 = vld [vmem:[#allocation6 + $0xc] sm:$0xf]
    %v109 = vld [vmem:[#allocation6 + $0x10] sm:$0xf]
    %v110 = vld [vmem:[#allocation6 + $0x14] sm:$0xf]
    %v111 = vld [vmem:[#allocation6 + $0x18] sm:$0xf]
    %v112 = vld [vmem:[#allocation6 + $0x1c] sm:$0xf]
    %v113 = vld [vmem:[#allocation6 + $0x20] sm:$0xf]
    %v114 = vld [vmem:[#allocation6 + $0x24] sm:$0xf]
    %v115 = vld [vmem:[#allocation6 + $0x28] sm:$0xf]
    %v116 = vld [vmem:[#allocation6 + $0x2c] sm:$0xf]
    %v117 = vld [vmem:[#allocation6 + $0x30] sm:$0xf]
    %v118 = vld [vmem:[#allocation6 + $0x34] sm:$0xf]
    %v119 = vld [vmem:[#allocation6 + $0x38] sm:$0xf]
    %v120 = vld [vmem:[#allocation6 + $0x3c] sm:$0xf]
    %v121 = vld [vmem:[#allocation6 + $0x40] sm:$0xf]
    %v122 = vld [vmem:[#allocation6 + $0x44] sm:$0xf]
    %v123 = vld [vmem:[#allocation6 + $0x48] sm:$0xf]
    %v124 = vld [vmem:[#allocation6 + $0x4c] sm:$0xf]
    %v125 = vld [vmem:[#allocation6 + $0x50] sm:$0xf]
    %v126 = vld [vmem:[#allocation6 + $0x54] sm:$0xf]
    %v127 = vld [vmem:[#allocation6 + $0x58] sm:$0xf]
    %v128 = vld [vmem:[#allocation6 + $0x5c] sm:$0xf]
    %v129 = vld [vmem:[#allocation6 + $0x60] sm:$0xf]
    %v130 = vld [vmem:[#allocation6 + $0x64] sm:$0xf]
    %v131 = vld [vmem:[#allocation6 + $0x68] sm:$0xf]
    %v132 = vld [vmem:[#allocation6 + $0x6c] sm:$0xf]
    %v133 = vld [vmem:[#allocation6 + $0x70] sm:$0xf]
    %v134 = vld [vmem:[#allocation6 + $0x74] sm:$0xf]
    %v135 = vld [vmem:[#allocation6 + $0x78] sm:$0xf]
    %v136 = vld [vmem:[#allocation6 + $0x7c] sm:$0xf]
    %v137 = vld [vmem:[#allocation6 + $0x80] sm:$0xf]
    %v138 = vld [vmem:[#allocation6 + $0x84] sm:$0xf]
    %v139 = vld [vmem:[#allocation6 + $0x88] sm:$0xf]
    %v140 = vld [vmem:[#allocation6 + $0x8c] sm:$0xf]
    %v141 = vld [vmem:[#allocation6 + $0x90] sm:$0xf]
    %v142 = vld [vmem:[#allocation6 + $0x94] sm:$0xf]
    %v143 = vld [vmem:[#allocation6 + $0x98] sm:$0xf]
    %v144 = vld [vmem:[#allocation6 + $0x9c] sm:$0xf]
    %v145 = vld [vmem:[#allocation6 + $0xa0] sm:$0xf]
    %v146 = vld [vmem:[#allocation6 + $0xa4] sm:$0xf]
    %v147 = vld [vmem:[#allocation6 + $0xa8] sm:$0xf]
    %v148 = vld [vmem:[#allocation6 + $0xac] sm:$0xf]
    %v149 = vld [vmem:[#allocation6 + $0xb0] sm:$0xf]
    %v150 = vld [vmem:[#allocation6 + $0xb4] sm:$0xf]
    %v151 = vld [vmem:[#allocation6 + $0xb8] sm:$0xf]
    %v152 = vld [vmem:[#allocation6 + $0xbc] sm:$0xf]
    %v201 = vunpack.c.l.b16 %v105
    %v202 = vunpack.c.l.b16 %v106
    %v203 = vunpack.c.l.b16 %v107
    %v204 = vunpack.c.l.b16 %v108
    %v205 = vunpack.c.l.b16 %v109
    %v206 = vunpack.c.l.b16 %v110
    %v207 = vunpack.c.l.b16 %v111
    %v208 = vunpack.c.l.b16 %v112
    %v209 = vunpack.c.l.b16 %v113
    %v210 = vunpack.c.l.b16 %v114
    %v211 = vunpack.c.l.b16 %v115
    %v212 = vunpack.c.l.b16 %v116
    %v213 = vunpack.c.l.b16 %v117
    %v214 = vunpack.c.l.b16 %v118
    %v215 = vunpack.c.l.b16 %v119
    %v216 = vunpack.c.l.b16 %v120
    %v217 = vunpack.c.l.b16 %v121
    %v218 = vunpack.c.l.b16 %v122
    %v219 = vunpack.c.l.b16 %v123
    %v220 = vunpack.c.l.b16 %v124
    %v221 = vunpack.c.l.b16 %v125
    %v222 = vunpack.c.l.b16 %v126
    %v223 = vunpack.c.l.b16 %v127
    %v224 = vunpack.c.l.b16 %v128
    %v225 = vunpack.c.l.b16 %v129
    %v226 = vunpack.c.l.b16 %v130
    %v227 = vunpack.c.l.b16 %v131
    %v228 = vunpack.c.l.b16 %v132
    %v229 = vunpack.c.l.b16 %v133
    %v230 = vunpack.c.l.b16 %v134
    %v231 = vunpack.c.l.b16 %v135
    %v232 = vunpack.c.l.b16 %v136
    %v233 = vunpack.c.l.b16 %v137
    %v234 = vunpack.c.l.b16 %v138
    %v235 = vunpack.c.l.b16 %v139
    %v236 = vunpack.c.l.b16 %v140
    %v237 = vunpack.c.l.b16 %v141
    %v238 = vunpack.c.l.b16 %v142
    %v239 = vunpack.c.l.b16 %v143
    %v240 = vunpack.c.l.b16 %v144
    %v241 = vunpack.c.l.b16 %v145
    %v242 = vunpack.c.l.b16 %v146
    %v243 = vunpack.c.l.b16 %v147
    %v244 = vunpack.c.l.b16 %v148
    %v245 = vunpack.c.l.b16 %v149
    %v246 = vunpack.c.l.b16 %v150
    %v247 = vunpack.c.l.b16 %v151
    %v248 = vunpack.c.l.b16 %v152
    %v249 = vpack.c.b16 %v202, %v201
    %v250 = vpack.c.b16 %v204, %v203
    %v251 = vpack.c.b16 %v206, %v205
    %v252 = vpack.c.b16 %v208, %v207
    %v253 = vpack.c.b16 %v210, %v209
    %v254 = vpack.c.b16 %v212, %v211
    %v255 = vpack.c.b16 %v214, %v213
    %v256 = vpack.c.b16 %v216, %v215
    %v257 = vpack.c.b16 %v218, %v217
    %v258 = vpack.c.b16 %v220, %v219
    %v259 = vpack.c.b16 %v222, %v221
    %v260 = vpack.c.b16 %v224, %v223
    %v261 = vpack.c.b16 %v226, %v225
    %v262 = vpack.c.b16 %v228, %v227
    %v263 = vpack.c.b16 %v230, %v229
    %v264 = vpack.c.b16 %v232, %v231
    %v265 = vpack.c.b16 %v234, %v233
    %v266 = vpack.c.b16 %v236, %v235
    %v267 = vpack.c.b16 %v238, %v237
    %v268 = vpack.c.b16 %v240, %v239
    %v269 = vpack.c.b16 %v242, %v241
    %v270 = vpack.c.b16 %v244, %v243
    %v271 = vpack.c.b16 %v246, %v245
    %v272 = vpack.c.b16 %v248, %v247
    %297 = vmatprep.subr.bf16.mxu0 0
    %298 = vmatpush1.bf16.msra.mxu0 %v256
    %299 = vmatprep.subr.bf16.mxu0 0
    %300 = vmatpush1.bf16.msra.mxu0 %v255
    %301 = vmatprep.subr.bf16.mxu0 0
    %302 = vmatpush1.bf16.msra.mxu0 %v254
    %303 = vmatprep.subr.bf16.mxu0 0
    %304 = vmatpush1.bf16.msra.mxu0 %v253
    %305 = vmatprep.subr.bf16.mxu0 0
    %306 = vmatpush1.bf16.msra.mxu0 %v252
    %307 = vmatprep.subr.bf16.mxu0 0
    %308 = vmatpush1.bf16.msra.mxu0 %v251
    %309 = vmatprep.subr.bf16.mxu0 0
    %310 = vmatpush1.bf16.msra.mxu0 %v250
    %311 = vmatprep.subr.bf16.mxu0 0
    %312 = vmatpush1.bf16.msra.mxu0 %v249
    %313 = vmatprep.subr.bf16.mxu0 0
    %314 = vmatpush2.bf16.msra.mxu0 %v264
    %315 = vmatprep.subr.bf16.mxu0 0
    %316 = vmatpush2.bf16.msra.mxu0 %v263
    %317 = vmatprep.subr.bf16.mxu0 0
    %318 = vmatpush2.bf16.msra.mxu0 %v262
    %319 = vmatprep.subr.bf16.mxu0 0
    %320 = vmatpush2.bf16.msra.mxu0 %v261
    %321 = vmatprep.subr.bf16.mxu0 0
    %322 = vmatpush2.bf16.msra.mxu0 %v260
    %323 = vmatprep.subr.bf16.mxu0 0
    %324 = vmatpush2.bf16.msra.mxu0 %v259
    %325 = vmatprep.subr.bf16.mxu0 0
    %326 = vmatpush2.bf16.msra.mxu0 %v258
    %327 = vmatprep.subr.bf16.mxu0 0
    %328 = vmatpush2.bf16.msra.mxu0 %v257
    %329 = vmatprep.mubr.bf16.mxu0 %v97
    %330 = vmatmul.mubr.bf16.gmra.mxu0 %v96
    %v331 = vpop.f32.mrf.mxu0
    %v332 = vadd.f32 0.0, %v331
    %v333 = vpop.f32.mrf.mxu0
    %v334 = vpop.f32.mrf.mxu0
    %v335 = vadd.f32 0.0, %v334
    %v336 = vpop.f32.mrf.mxu0
    %337 = vmatprep.mubr.bf16.mxu0 %v100
    %338 = vmatmul.mubr.bf16.gmra.mxu0 %v99
    %v339 = vpop.f32.mrf.mxu0
    %v340 = vadd.f32 0.0, %v339
    %v341 = vpop.f32.mrf.mxu0
    %v342 = vpop.f32.mrf.mxu0
    %v343 = vadd.f32 0.0, %v342
    %v344 = vpop.f32.mrf.mxu0
    %345 = vmatprep.mubr.bf16.mxu0 %v103
    %346 = vmatmul.mubr.bf16.gmra.mxu0 %v102
    %v347 = vpop.f32.mrf.mxu0
    %v348 = vadd.f32 0.0, %v347
    %v349 = vpop.f32.mrf.mxu0
    %v350 = vpop.f32.mrf.mxu0
    %v351 = vpop.f32.mrf.mxu0
    %352 = vdwg.mxu0
    %353 = vmatprep.subr.bf16.mxu0 0
    %354 = vmatpush1.bf16.msra.mxu0 %v272
    %355 = vmatprep.subr.bf16.mxu0 0
    %356 = vmatpush1.bf16.msra.mxu0 %v271
    %357 = vmatprep.subr.bf16.mxu0 0
    %358 = vmatpush1.bf16.msra.mxu0 %v270
    %359 = vmatprep.subr.bf16.mxu0 0
    %360 = vmatpush1.bf16.msra.mxu0 %v269
    %361 = vmatprep.subr.bf16.mxu0 0
    %362 = vmatpush1.bf16.msra.mxu0 %v268
    %363 = vmatprep.subr.bf16.mxu0 0
    %364 = vmatpush1.bf16.msra.mxu0 %v267
    %365 = vmatprep.subr.bf16.mxu0 0
    %366 = vmatpush1.bf16.msra.mxu0 %v266
    %367 = vmatprep.subr.bf16.mxu0 0
    %368 = vmatpush1.bf16.msra.mxu0 %v265
    %369 = vmatprep.subr.bf16.mxu0 0
    %370 = vmatpush2.bf16.msra.mxu0 0
    %371 = vmatprep.subr.bf16.mxu0 0
    %372 = vmatpush2.bf16.msra.mxu0 0
    %373 = vmatprep.subr.bf16.mxu0 0
    %374 = vmatpush2.bf16.msra.mxu0 0
    %375 = vmatprep.subr.bf16.mxu0 0
    %376 = vmatpush2.bf16.msra.mxu0 0
    %377 = vmatprep.subr.bf16.mxu0 0
    %378 = vmatpush2.bf16.msra.mxu0 0
    %379 = vmatprep.subr.bf16.mxu0 0
    %380 = vmatpush2.bf16.msra.mxu0 0
    %381 = vmatprep.subr.bf16.mxu0 0
    %382 = vmatpush2.bf16.msra.mxu0 0
    %383 = vmatprep.subr.bf16.mxu0 0
    %384 = vmatpush2.bf16.msra.mxu0 0
    %385 = vmatprep.mubr.bf16.mxu0 0
    %386 = vmatmul.mubr.bf16.gmra.mxu0 %v98
    %v387 = vpop.f32.mrf.mxu0
    %v388 = vadd.f32 %v332, %v387
    %v389 = vpop.f32.mrf.mxu0
    %v390 = vpop.f32.mrf.mxu0
    %v391 = vadd.f32 %v335, %v390
    %v392 = vpop.f32.mrf.mxu0
    %393 = vmatprep.mubr.bf16.mxu0 0
    %394 = vmatmul.mubr.bf16.gmra.mxu0 %v101
    %v395 = vpop.f32.mrf.mxu0
    %v396 = vadd.f32 %v340, %v395
    %v397 = vpop.f32.mrf.mxu0
    %v398 = vpop.f32.mrf.mxu0
    %v399 = vadd.f32 %v343, %v398
    %v400 = vpop.f32.mrf.mxu0
    %401 = vmatprep.mubr.bf16.mxu0 0
    %402 = vmatmul.mubr.bf16.gmra.mxu0 %v104
    %v403 = vpop.f32.mrf.mxu0
    %v404 = vadd.f32 %v348, %v403
    %v405 = vpop.f32.mrf.mxu0
    %v406 = vpop.f32.mrf.mxu0
    %v407 = vpop.f32.mrf.mxu0
    %408 = vdwg.mxu0
    %v409 = vld [vmem:[%s2] sm:$0x1]
    %v411 = vlaneseq
    %v412 = vshrl.u32 %v411, 7
    %v413 = vsub.s32 0, %v412
    %v414 = vrot.slane %v409, %v413
    %v416 = vmul.f32 %v388, %v414
    %v417 = vmul.f32 %v391, %v414
    %v418 = vmul.f32 %v396, %v414
    %v419 = vmul.f32 %v399, %v414
    %v420 = vmul.f32 %v404, %v414
    %v421 = vld [vmem:[%s3] sm:$0x1]
    %v423 = vlaneseq
    %v424 = vshrl.u32 %v423, 7
    %v425 = vsub.s32 0, %v424
    %v426 = vrot.slane %v421, %v425
    %v428 = vadd.f32 %v416, %v426
    %v429 = vadd.f32 %v417, %v426
    %v430 = vadd.f32 %v418, %v426
    %v431 = vadd.f32 %v419, %v426
    %v432 = vadd.f32 %v420, %v426
    %v433 = vmax.f32 %v428, 0.0
    %v434 = vmax.f32 %v429, 0.0
    %v435 = vmax.f32 %v430, 0.0
    %v436 = vmax.f32 %v431, 0.0
    %v437 = vmax.f32 %v432, 0.0
    %438 = vst [vmem:[#allocation2 + $0x1] sm:$0xff] %v433
    %439 = vst [vmem:[#allocation2 + $0x9] sm:$0xff] %v434
    %440 = vst [vmem:[#allocation2 + $0x11] sm:$0xfe] %v435
    %441 = vst [vmem:[#allocation2 + $0x19] sm:$0xff] %v436
    %442 = vst [vmem:[#allocation2 + $0x21] sm:$0x1] %v437
    %v443 = vld [vmem:[#allocation2] sm:$0xff]
    %v444 = vld [vmem:[#allocation2 + $0x8] sm:$0xff]
    %v445 = vld [vmem:[#allocation2 + $0x10] sm:$0xff]
    %v446 = vld [vmem:[#allocation2 + $0x18] sm:$0xff]
    %v447 = vld [vmem:[#allocation2 + $0x20] sm:$0x1]
    %v448 = vld [vmem:[#allocation2 + $0x1] sm:$0xff]
    %v449 = vld [vmem:[#allocation2 + $0x9] sm:$0xff]
    %v450 = vld [vmem:[#allocation2 + $0x11] sm:$0xff]
    %v451 = vld [vmem:[#allocation2 + $0x19] sm:$0xff]
    %v452 = vld [vmem:[#allocation2 + $0x21] sm:$0x1]
    %v453 = vld [vmem:[#allocation2 + $0x2] sm:$0xff]
    %v454 = vld [vmem:[#allocation2 + $0xa] sm:$0xff]
    %v455 = vld [vmem:[#allocation2 + $0x12] sm:$0xff]
    %v456 = vld [vmem:[#allocation2 + $0x1a] sm:$0xff]
    %v457 = vld [vmem:[#allocation2 + $0x22] sm:$0x1]
    %v458 = vpack.c.bf16 %v444, %v443
    %v459 = vpack.c.bf16 %v449, %v448
    %v460 = vpack.c.bf16 %v454, %v453
    %v461 = vpack.c.bf16 %v446, %v445
    %v462 = vpack.c.bf16 %v451, %v450
    %v463 = vpack.c.bf16 %v456, %v455
    %v464 = vpack.c.bf16 %v447, %v447
    %v465 = vpack.c.bf16 %v452, %v452
    %v466 = vpack.c.bf16 %v457, %v457
    %v467 = vld [vmem:[#allocation8] sm:$0xf]
    %v468 = vld [vmem:[#allocation8 + $0x4] sm:$0xf]
    %v469 = vld [vmem:[#allocation8 + $0x8] sm:$0xf]
    %v470 = vld [vmem:[#allocation8 + $0xc] sm:$0xf]
    %v471 = vld [vmem:[#allocation8 + $0x10] sm:$0xf]
    %v472 = vld [vmem:[#allocation8 + $0x14] sm:$0xf]
    %v473 = vld [vmem:[#allocation8 + $0x18] sm:$0xf]
    %v474 = vld [vmem:[#allocation8 + $0x1c] sm:$0xf]
    %v475 = vld [vmem:[#allocation8 + $0x20] sm:$0xf]
    %v476 = vld [vmem:[#allocation8 + $0x24] sm:$0xf]
    %v477 = vld [vmem:[#allocation8 + $0x28] sm:$0xf]
    %v478 = vld [vmem:[#allocation8 + $0x2c] sm:$0xf]
    %v479 = vld [vmem:[#allocation8 + $0x30] sm:$0xf]
    %v480 = vld [vmem:[#allocation8 + $0x34] sm:$0xf]
    %v481 = vld [vmem:[#allocation8 + $0x38] sm:$0xf]
    %v482 = vld [vmem:[#allocation8 + $0x3c] sm:$0xf]
    %v483 = vld [vmem:[#allocation8 + $0x40] sm:$0xf]
    %v484 = vld [vmem:[#allocation8 + $0x44] sm:$0xf]
    %v485 = vld [vmem:[#allocation8 + $0x48] sm:$0xf]
    %v486 = vld [vmem:[#allocation8 + $0x4c] sm:$0xf]
    %v487 = vld [vmem:[#allocation8 + $0x50] sm:$0xf]
    %v488 = vld [vmem:[#allocation8 + $0x54] sm:$0xf]
    %v489 = vld [vmem:[#allocation8 + $0x58] sm:$0xf]
    %v490 = vld [vmem:[#allocation8 + $0x5c] sm:$0xf]
    %v491 = vld [vmem:[#allocation8 + $0x60] sm:$0xf]
    %v492 = vld [vmem:[#allocation8 + $0x64] sm:$0xf]
    %v493 = vld [vmem:[#allocation8 + $0x68] sm:$0xf]
    %v494 = vld [vmem:[#allocation8 + $0x6c] sm:$0xf]
    %v495 = vld [vmem:[#allocation8 + $0x70] sm:$0xf]
    %v496 = vld [vmem:[#allocation8 + $0x74] sm:$0xf]
    %v497 = vld [vmem:[#allocation8 + $0x78] sm:$0xf]
    %v498 = vld [vmem:[#allocation8 + $0x7c] sm:$0xf]
    %v499 = vld [vmem:[#allocation8 + $0x80] sm:$0xf]
    %v500 = vld [vmem:[#allocation8 + $0x84] sm:$0xf]
    %v501 = vld [vmem:[#allocation8 + $0x88] sm:$0xf]
    %v502 = vld [vmem:[#allocation8 + $0x8c] sm:$0xf]
    %v503 = vld [vmem:[#allocation8 + $0x90] sm:$0xf]
    %v504 = vld [vmem:[#allocation8 + $0x94] sm:$0xf]
    %v505 = vld [vmem:[#allocation8 + $0x98] sm:$0xf]
    %v506 = vld [vmem:[#allocation8 + $0x9c] sm:$0xf]
    %v507 = vld [vmem:[#allocation8 + $0xa0] sm:$0xf]
    %v508 = vld [vmem:[#allocation8 + $0xa4] sm:$0xf]
    %v509 = vld [vmem:[#allocation8 + $0xa8] sm:$0xf]
    %v510 = vld [vmem:[#allocation8 + $0xac] sm:$0xf]
    %v511 = vld [vmem:[#allocation8 + $0xb0] sm:$0xf]
    %v512 = vld [vmem:[#allocation8 + $0xb4] sm:$0xf]
    %v513 = vld [vmem:[#allocation8 + $0xb8] sm:$0xf]
    %v514 = vld [vmem:[#allocation8 + $0xbc] sm:$0xf]
    %v563 = vunpack.c.l.b16 %v467
    %v564 = vunpack.c.l.b16 %v468
    %v565 = vunpack.c.l.b16 %v469
    %v566 = vunpack.c.l.b16 %v470
    %v567 = vunpack.c.l.b16 %v471
    %v568 = vunpack.c.l.b16 %v472
    %v569 = vunpack.c.l.b16 %v473
    %v570 = vunpack.c.l.b16 %v474
    %v571 = vunpack.c.l.b16 %v475
    %v572 = vunpack.c.l.b16 %v476
    %v573 = vunpack.c.l.b16 %v477
    %v574 = vunpack.c.l.b16 %v478
    %v575 = vunpack.c.l.b16 %v479
    %v576 = vunpack.c.l.b16 %v480
    %v577 = vunpack.c.l.b16 %v481
    %v578 = vunpack.c.l.b16 %v482
    %v579 = vunpack.c.l.b16 %v483
    %v580 = vunpack.c.l.b16 %v484
    %v581 = vunpack.c.l.b16 %v485
    %v582 = vunpack.c.l.b16 %v486
    %v583 = vunpack.c.l.b16 %v487
    %v584 = vunpack.c.l.b16 %v488
    %v585 = vunpack.c.l.b16 %v489
    %v586 = vunpack.c.l.b16 %v490
    %v587 = vunpack.c.l.b16 %v491
    %v588 = vunpack.c.l.b16 %v492
    %v589 = vunpack.c.l.b16 %v493
    %v590 = vunpack.c.l.b16 %v494
    %v591 = vunpack.c.l.b16 %v495
    %v592 = vunpack.c.l.b16 %v496
    %v593 = vunpack.c.l.b16 %v497
    %v594 = vunpack.c.l.b16 %v498
    %v595 = vunpack.c.l.b16 %v499
    %v596 = vunpack.c.l.b16 %v500
    %v597 = vunpack.c.l.b16 %v501
    %v598 = vunpack.c.l.b16 %v502
    %v599 = vunpack.c.l.b16 %v503
    %v600 = vunpack.c.l.b16 %v504
    %v601 = vunpack.c.l.b16 %v505
    %v602 = vunpack.c.l.b16 %v506
    %v603 = vunpack.c.l.b16 %v507
    %v604 = vunpack.c.l.b16 %v508
    %v605 = vunpack.c.l.b16 %v509
    %v606 = vunpack.c.l.b16 %v510
    %v607 = vunpack.c.l.b16 %v511
    %v608 = vunpack.c.l.b16 %v512
    %v609 = vunpack.c.l.b16 %v513
    %v610 = vunpack.c.l.b16 %v514
    %v611 = vpack.c.b16 %v564, %v563
    %v612 = vpack.c.b16 %v566, %v565
    %v613 = vpack.c.b16 %v568, %v567
    %v614 = vpack.c.b16 %v570, %v569
    %v615 = vpack.c.b16 %v572, %v571
    %v616 = vpack.c.b16 %v574, %v573
    %v617 = vpack.c.b16 %v576, %v575
    %v618 = vpack.c.b16 %v578, %v577
    %v619 = vpack.c.b16 %v580, %v579
    %v620 = vpack.c.b16 %v582, %v581
    %v621 = vpack.c.b16 %v584, %v583
    %v622 = vpack.c.b16 %v586, %v585
    %v623 = vpack.c.b16 %v588, %v587
    %v624 = vpack.c.b16 %v590, %v589
    %v625 = vpack.c.b16 %v592, %v591
    %v626 = vpack.c.b16 %v594, %v593
    %v627 = vpack.c.b16 %v596, %v595
    %v628 = vpack.c.b16 %v598, %v597
    %v629 = vpack.c.b16 %v600, %v599
    %v630 = vpack.c.b16 %v602, %v601
    %v631 = vpack.c.b16 %v604, %v603
    %v632 = vpack.c.b16 %v606, %v605
    %v633 = vpack.c.b16 %v608, %v607
    %v634 = vpack.c.b16 %v610, %v609
    %659 = vmatprep.subr.bf16.mxu0 0
    %660 = vmatpush1.bf16.msra.mxu0 %v618
    %661 = vmatprep.subr.bf16.mxu0 0
    %662 = vmatpush1.bf16.msra.mxu0 %v617
    %663 = vmatprep.subr.bf16.mxu0 0
    %664 = vmatpush1.bf16.msra.mxu0 %v616
    %665 = vmatprep.subr.bf16.mxu0 0
    %666 = vmatpush1.bf16.msra.mxu0 %v615
    %667 = vmatprep.subr.bf16.mxu0 0
    %668 = vmatpush1.bf16.msra.mxu0 %v614
    %669 = vmatprep.subr.bf16.mxu0 0
    %670 = vmatpush1.bf16.msra.mxu0 %v613
    %671 = vmatprep.subr.bf16.mxu0 0
    %672 = vmatpush1.bf16.msra.mxu0 %v612
    %673 = vmatprep.subr.bf16.mxu0 0
    %674 = vmatpush1.bf16.msra.mxu0 %v611
    %675 = vmatprep.subr.bf16.mxu0 0
    %676 = vmatpush2.bf16.msra.mxu0 %v626
    %677 = vmatprep.subr.bf16.mxu0 0
    %678 = vmatpush2.bf16.msra.mxu0 %v625
    %679 = vmatprep.subr.bf16.mxu0 0
    %680 = vmatpush2.bf16.msra.mxu0 %v624
    %681 = vmatprep.subr.bf16.mxu0 0
    %682 = vmatpush2.bf16.msra.mxu0 %v623
    %683 = vmatprep.subr.bf16.mxu0 0
    %684 = vmatpush2.bf16.msra.mxu0 %v622
    %685 = vmatprep.subr.bf16.mxu0 0
    %686 = vmatpush2.bf16.msra.mxu0 %v621
    %687 = vmatprep.subr.bf16.mxu0 0
    %688 = vmatpush2.bf16.msra.mxu0 %v620
    %689 = vmatprep.subr.bf16.mxu0 0
    %690 = vmatpush2.bf16.msra.mxu0 %v619
    %691 = vmatprep.mubr.bf16.mxu0 %v459
    %692 = vmatmul.mubr.bf16.gmra.mxu0 %v458
    %v693 = vpop.f32.mrf.mxu0
    %v694 = vadd.f32 0.0, %v693
    %v695 = vpop.f32.mrf.mxu0
    %v696 = vpop.f32.mrf.mxu0
    %v697 = vadd.f32 0.0, %v696
    %v698 = vpop.f32.mrf.mxu0
    %699 = vmatprep.mubr.bf16.mxu0 %v462
    %700 = vmatmul.mubr.bf16.gmra.mxu0 %v461
    %v701 = vpop.f32.mrf.mxu0
    %v702 = vadd.f32 0.0, %v701
    %v703 = vpop.f32.mrf.mxu0
    %v704 = vpop.f32.mrf.mxu0
    %v705 = vadd.f32 0.0, %v704
    %v706 = vpop.f32.mrf.mxu0
    %707 = vmatprep.mubr.bf16.mxu0 %v465
    %708 = vmatmul.mubr.bf16.gmra.mxu0 %v464
    %v709 = vpop.f32.mrf.mxu0
    %v710 = vadd.f32 0.0, %v709
    %v711 = vpop.f32.mrf.mxu0
    %v712 = vpop.f32.mrf.mxu0
    %v713 = vpop.f32.mrf.mxu0
    %714 = vdwg.mxu0
    %715 = vmatprep.subr.bf16.mxu0 0
    %716 = vmatpush1.bf16.msra.mxu0 %v634
    %717 = vmatprep.subr.bf16.mxu0 0
    %718 = vmatpush1.bf16.msra.mxu0 %v633
    %719 = vmatprep.subr.bf16.mxu0 0
    %720 = vmatpush1.bf16.msra.mxu0 %v632
    %721 = vmatprep.subr.bf16.mxu0 0
    %722 = vmatpush1.bf16.msra.mxu0 %v631
    %723 = vmatprep.subr.bf16.mxu0 0
    %724 = vmatpush1.bf16.msra.mxu0 %v630
    %725 = vmatprep.subr.bf16.mxu0 0
    %726 = vmatpush1.bf16.msra.mxu0 %v629
    %727 = vmatprep.subr.bf16.mxu0 0
    %728 = vmatpush1.bf16.msra.mxu0 %v628
    %729 = vmatprep.subr.bf16.mxu0 0
    %730 = vmatpush1.bf16.msra.mxu0 %v627
    %731 = vmatprep.subr.bf16.mxu0 0
    %732 = vmatpush2.bf16.msra.mxu0 0
    %733 = vmatprep.subr.bf16.mxu0 0
    %734 = vmatpush2.bf16.msra.mxu0 0
    %735 = vmatprep.subr.bf16.mxu0 0
    %736 = vmatpush2.bf16.msra.mxu0 0
    %737 = vmatprep.subr.bf16.mxu0 0
    %738 = vmatpush2.bf16.msra.mxu0 0
    %739 = vmatprep.subr.bf16.mxu0 0
    %740 = vmatpush2.bf16.msra.mxu0 0
    %741 = vmatprep.subr.bf16.mxu0 0
    %742 = vmatpush2.bf16.msra.mxu0 0
    %743 = vmatprep.subr.bf16.mxu0 0
    %744 = vmatpush2.bf16.msra.mxu0 0
    %745 = vmatprep.subr.bf16.mxu0 0
    %746 = vmatpush2.bf16.msra.mxu0 0
    %747 = vmatprep.mubr.bf16.mxu0 0
    %748 = vmatmul.mubr.bf16.gmra.mxu0 %v460
    %v749 = vpop.f32.mrf.mxu0
    %v750 = vadd.f32 %v694, %v749
    %v751 = vpop.f32.mrf.mxu0
    %v752 = vpop.f32.mrf.mxu0
    %v753 = vadd.f32 %v697, %v752
    %v754 = vpop.f32.mrf.mxu0
    %755 = vmatprep.mubr.bf16.mxu0 0
    %756 = vmatmul.mubr.bf16.gmra.mxu0 %v463
    %v757 = vpop.f32.mrf.mxu0
    %v758 = vadd.f32 %v702, %v757
    %v759 = vpop.f32.mrf.mxu0
    %v760 = vpop.f32.mrf.mxu0
    %v761 = vadd.f32 %v705, %v760
    %v762 = vpop.f32.mrf.mxu0
    %763 = vmatprep.mubr.bf16.mxu0 0
    %764 = vmatmul.mubr.bf16.gmra.mxu0 %v466
    %v765 = vpop.f32.mrf.mxu0
    %v766 = vadd.f32 %v710, %v765
    %v767 = vpop.f32.mrf.mxu0
    %v768 = vpop.f32.mrf.mxu0
    %v769 = vpop.f32.mrf.mxu0
    %770 = vdwg.mxu0
    %v771 = vld [vmem:[%s5] sm:$0x1]
    %v773 = vlaneseq
    %v774 = vshrl.u32 %v773, 7
    %v775 = vsub.s32 0, %v774
    %v776 = vrot.slane %v771, %v775
    %v778 = vmul.f32 %v750, %v776
    %v779 = vmul.f32 %v753, %v776
    %v780 = vmul.f32 %v758, %v776
    %v781 = vmul.f32 %v761, %v776
    %v782 = vmul.f32 %v766, %v776
    %v783 = vld [vmem:[%s6] sm:$0x1]
    %v785 = vlaneseq
    %v786 = vshrl.u32 %v785, 7
    %v787 = vsub.s32 0, %v786
    %v788 = vrot.slane %v783, %v787
    %v790 = vadd.f32 %v778, %v788
    %v791 = vadd.f32 %v779, %v788
    %v792 = vadd.f32 %v780, %v788
    %v793 = vadd.f32 %v781, %v788
    %v794 = vadd.f32 %v782, %v788
    %v795 = vld [vmem:[#allocation3] sm:$0xff]
    %v796 = vld [vmem:[#allocation3 + $0x8] sm:$0xff]
    %v797 = vadd.f32 %v790, %v795
    %v798 = vadd.f32 %v791, %v796
    %v799 = vmax.f32 %v797, 0.0
    %v800 = vmax.f32 %v798, 0.0
    %801 = vst [vmem:[#allocation9] sm:$0xff] %v799
    %802 = vst [vmem:[#allocation9 + $0x8] sm:$0xff] %v800
    %v803 = vld [vmem:[%s76] sm:$0xff]
    %v804 = vld [vmem:[%s76 + $0x8] sm:$0xff]
    %vm807 = vcmask 1040384
    %v808 = vrot.slane %v803, 7
    %v809 = vrot.slane %v804, 7
    %v810 = vsel %vm807, %v808, %v809
    %v814 = vadd.f32 %v792, %v808
    %v815 = vadd.f32 %v793, %v810
    %v816 = vadd.f32 %v794, %v809
    %v817 = vmax.f32 %v814, 0.0
    %v818 = vmax.f32 %v815, 0.0
    %v819 = vmax.f32 %v816, 0.0
    %s820 = scalar_lea.vmem [#allocation9], 16
    %821 = vst [vmem:[%s820 - $0x1] sm:$0xfe] %v817
    %822 = vst [vmem:[%s820 + $0x7] sm:$0xff] %v818
    %823 = vst [vmem:[%s820 + $0xf] sm:$0x1] %v819
    // Predicated region
    $region42: #{tpu_custom_call.1} parent=1 // pred_check
      _
    $region43: #{tpu_custom_call.1} parent=1 // pred_check_branch
      %825 = sbr.rel (0) target = $region45
    $region44: #{tpu_custom_call.1} parent=1 // pred_region
      %s827 = ssub.s32 512, 512
      %828 = vsyncadd [#allocation5], %s827
      %s829 = sshll.u32 [#allocation9], 4
      %s830 = int_to_ptr.vmem [resolvable:$true] %s829
      %835 = dma.vmem_to_hbm [thread:$0]  %s830, 512, %s7, [#allocation5], 128, 128, 8
    $region45: #{tpu_custom_call.1} parent=1 // pred_fallthru
      _
    // Predicated region
    $region46: #{tpu_custom_call.1} parent=1 // pred_check
      _
    $region47: #{tpu_custom_call.1} parent=1 // pred_check_branch
      %837 = sbr.rel (0) target = $region49
    $region48: #{tpu_custom_call.1} parent=1 // pred_region
      %838 = dma.done [#allocation5], 512
    $region49: #{tpu_custom_call.1} parent=1 // pred_fallthru
      _
    %839 = vsyncpa [#allocation4], 1
    %840 = vsyncpa [#allocation7], 1
    %841 = vsyncpa [#allocation5], 1

</llo_original>
